<compile_context>
chip_gen: v6e
topology: v6e:2x2x1
jax: 0.10.0
libtpu: 0.0.40
codegen_flags: <defaults>
</compile_context>

<pallas_src>
import functools
import math

import jax
import jax.numpy as jnp
from jax.experimental import pallas as pl
from jax.experimental.pallas import tpu as pltpu


def _label_smoothing_kernel(pred_ref, tgt_ref, loss_ref, *,
                            confidence, uniform_conf, plogp_const,
                            ignore_index, num_classes):
    x = pred_ref[...].astype(jnp.float32)            # (T, C)
    # Targets arrive lane-dense as (1, 1, T); one small relayout to a column.
    tgt = tgt_ref[...].reshape(-1, 1)                 # (T, 1) int32

    # log-softmax pieces over the class (lane) axis; the full logp tile is
    # never materialized.
    m = jnp.max(x, axis=-1, keepdims=True)                        # (T, 1)
    z = x - m                                                     # (T, C)
    lse = jnp.log(jnp.sum(jnp.exp(z), axis=-1, keepdims=True))    # (T, 1)

    # Smoothed target distribution takes only two values (confidence at the
    # target class, uniform_conf elsewhere) and sums to 1 per row, so
    #   sum_c p_c * logp_c = sum_c p_c * z_c - lse.
    # One weighted reduce replaces the previous (masked z_tgt, sum_z) pair.
    col = jax.lax.broadcasted_iota(jnp.int32, (1, num_classes), 1)  # (1, C)
    w = jnp.where(col == tgt, jnp.float32(confidence),
                  jnp.float32(uniform_conf))                        # (T, C)
    row_ce = jnp.sum(w * z, axis=-1, keepdims=True) - lse           # (T, 1)

    # KL(p || q) per row = sum_c p*log p - sum_c p*log q; zero for pad rows.
    row_loss = jnp.float32(plogp_const) - row_ce                    # (T, 1)
    row_loss = jnp.where(tgt != ignore_index, row_loss, jnp.float32(0.0))

    # NOTE: if a v7x bundle dump shows the XLU slot saturated with bf16
    # inputs, the sum(w*z) reduce could be moved to the idle MXU via a
    # (C,128) ones matmul; kept on the XLU here for portability (bad on v5e).
    block_loss = jnp.sum(row_loss)

    # One (1,128) vreg of writeback per grid step; wrapper reads [:, 0, 0].
    loss_ref[...] = jnp.full(loss_ref.shape, block_loss, jnp.float32)


def _vmem_capacity_bytes():
    """Per-generation physical VMEM, used to size tiles and vmem_limit."""
    try:
        return int(pltpu.get_tpu_info().vmem_capacity_bytes)
    except Exception:
        pass
    try:
        kind = jax.devices()[0].device_kind.lower()
    except Exception:
        kind = ""
    if "v7" in kind:
        return 64 * 1024 * 1024
    if any(v in kind for v in ("v4", "v5", "v6")):
        return 128 * 1024 * 1024
    return 64 * 1024 * 1024          # conservative: never over-budgets


def _pick_row_tile(n_rows, num_classes, itemsize, vmem_budget_bytes,
                   min_blocks=4):
    """Largest 8-aligned row tile that (a) keeps the double-buffered pred
    tile plus ~7 full-tile f32 temporaries inside the VMEM budget and
    (b) leaves the grid with >= min_blocks steps so both v7x TensorCores get
    work and per-TC DMA/compute overlap exists."""
    bytes_per_row = num_classes * (2 * itemsize + 7 * 4) + 2 * 4
    t = max(8, vmem_budget_bytes // bytes_per_row)
    t = min(t, 1024)                                   # diminishing returns
    per_block = max(8, ((-(-n_rows // min_blocks)) + 7) // 8 * 8)
    t = min(t, per_block)
    t = min(t, ((n_rows + 7) // 8) * 8)                # don't exceed problem
    return int(max(8, (t // 8) * 8))


def label_smoothing_loss(pred, target, ignore_index, smoothing_coeff,
                         divide_by_non_zeros=True, row_tile=None):
    """pred: (B, S, C) float (f32 or bf16 -- bf16 halves HBM traffic);
    target: (B, S) int."""
    assert 0.0 <= smoothing_coeff <= 1.0
    B, S, C = pred.shape
    N = B * S

    vmem_cap = _vmem_capacity_bytes()
    if vmem_cap <= 64 * 1024 * 1024:
        # v7x: leave ~16 MiB for Mosaic internal scratch / output buffers.
        vmem_limit = (vmem_cap * 3) // 4
    else:
        vmem_limit = min((vmem_cap * 7) // 8, 100 * 1024 * 1024)

    if row_tile is None:
        row_tile = _pick_row_tile(N, C, pred.dtype.itemsize, vmem_limit)

    # Pad N up to a multiple of row_tile; padded rows use ignore_index so
    # they contribute nothing to the loss sum.
    n_pad = ((N + row_tile - 1) // row_tile) * row_tile
    num_blocks = n_pad // row_tile

    pred2 = pred.reshape(N, C)
    tgt1 = target.reshape(N).astype(jnp.int32)
    if n_pad != N:
        pred2 = jnp.pad(pred2, ((0, n_pad - N), (0, 0)))
        tgt1 = jnp.pad(tgt1, (0, n_pad - N), constant_values=int(ignore_index))
    # Lane-dense targets: one contiguous 4*row_tile-byte DMA per grid step.
    tgt3 = tgt1.reshape(num_blocks, 1, row_tile)

    uniform_conf = smoothing_coeff / (C - 1)
    confidence = 1.0 - smoothing_coeff
    # sum_c p*log p for a non-pad row; 0*log0 := 0 guards smoothing in {0,1}.
    plogp = 0.0
    if confidence > 0.0:
        plogp += confidence * math.log(confidence)
    if uniform_conf > 0.0:
        plogp += (C - 1) * uniform_conf * math.log(uniform_conf)

    kernel = functools.partial(
        _label_smoothing_kernel,
        confidence=float(confidence),
        uniform_conf=float(uniform_conf),
        plogp_const=float(plogp),
        ignore_index=int(ignore_index),
        num_classes=C,
    )

    loss_part = pl.pallas_call(
        kernel,
        out_shape=jax.ShapeDtypeStruct((num_blocks, 1, 128), jnp.float32),
        grid_spec=pltpu.PrefetchScalarGridSpec(
            num_scalar_prefetch=0,
            grid=(num_blocks,),
            in_specs=[
                pl.BlockSpec((row_tile, C), lambda i: (i, 0)),
                pl.BlockSpec((1, 1, row_tile), lambda i: (i, 0, 0)),
            ],
            out_specs=pl.BlockSpec((1, 1, 128), lambda i: (i, 0, 0)),
        ),
        compiler_params=pltpu.CompilerParams(
            dimension_semantics=("parallel",),
            vmem_limit_bytes=int(vmem_limit),
        ),
    )(pred2, tgt3)

    loss_sum = jnp.sum(loss_part[:, 0, 0])
    if divide_by_non_zeros:
        # The non-pad count is free on the tiny (B,S) target array.
        nonpad_cnt = jnp.sum(target != ignore_index).astype(jnp.float32)
        return loss_sum / nonpad_cnt
    return loss_sum


def _reference(pred, target, ignore_index, smoothing_coeff,
               divide_by_non_zeros=True):
    """Pure-JAX reference mirroring the PyTorch module."""
    B, S, C = pred.shape
    logp = jax.nn.log_softmax(pred.astype(jnp.float32), axis=-1)
    uniform_conf = smoothing_coeff / (C - 1)
    confidence = 1.0 - smoothing_coeff
    one_hot = jax.nn.one_hot(target, C, dtype=jnp.float32)
    model_prob = one_hot * confidence + (1.0 - one_hot) * uniform_conf
    pads = (target == ignore_index)
    model_prob = jnp.where(pads[..., None], 0.0, model_prob)
    pos = model_prob > 0
    safe_p = jnp.where(pos, model_prob, 1.0)
    elem = jnp.where(pos, model_prob * (jnp.log(safe_p) - logp), 0.0)
    elem = jnp.where(pads[..., None], 0.0, elem)
    tot = jnp.sum(elem)
    if divide_by_non_zeros:
        tot = tot / jnp.sum(~pads).astype(jnp.float32)
    return tot


if __name__ == "__main__":
    key = jax.random.PRNGKey(0)
    ignore_index = 0

    # Case 1: f32, C=32 — grid has 2 blocks, exercising the parallel partial
    # sum path.
    B, S, C = 2, 8, 32
    k1, k2 = jax.random.split(key)
    pred = jax.random.normal(k1, (B, S, C), dtype=jnp.float32)
    target = jax.random.randint(k2, (B, S), 0, C, dtype=jnp.int32)
    target = target.at[0, -2:].set(ignore_index)
    target = target.at[1, -1].set(ignore_index)
    out = jax.block_until_ready(
        label_smoothing_loss(pred, target, ignore_index, 0.1))
    ref = _reference(pred, target, ignore_index, 0.1)
    assert jnp.allclose(out, ref, rtol=1e-5, atol=1e-5), (out, ref)

    # Case 2: bf16 logits, C not a multiple of 128, 3-block grid, more pads.
    B2, S2, C2 = 2, 24, 50
    k3, k4 = jax.random.split(k1)
    pred_b = jax.random.normal(k3, (B2, S2, C2), jnp.float32).astype(jnp.bfloat16)
    target_b = jax.random.randint(k4, (B2, S2), 0, C2, dtype=jnp.int32)
    target_b = target_b.at[:, -4:].set(ignore_index)
    out_b = jax.block_until_ready(
        label_smoothing_loss(pred_b, target_b, ignore_index, 0.2))
    ref_b = _reference(pred_b, target_b, ignore_index, 0.2)
    assert jnp.allclose(out_b, ref_b, rtol=1e-4, atol=1e-4), (out_b, ref_b)

    print("KERNEL_OK")
</pallas_src>

<mosaic_0001>
module attributes {stable_mosaic.version = 11 : i64} {
  func.func @_label_smoothing_kernel(%arg0: i32, %arg1: memref<8x32xf32, #tpu.memory_space<vmem>>, %arg2: memref<1x1x8xi32, #tpu.memory_space<vmem>>, %arg3: memref<1x1x128xf32, #tpu.memory_space<vmem>>) attributes {dimension_semantics = [#tpu.dimension_semantics<parallel>], iteration_bounds = array<i64: 2>, scalar_prefetch = 0 : i64, scratch_operands = 0 : i64, tpu.core_type = #tpu.core_type<tc>, window_params = [{transform_indices = @transform_0, window_bounds = array<i64: 8, 32>}, {transform_indices = @transform_1, window_bounds = array<i64: 1, 1, 8>}, {transform_indices = @transform_2, window_bounds = array<i64: 1, 1, 128>}]} {
    %c0 = arith.constant 0 : index
    %c0_0 = arith.constant 0 : index
    %0 = vector.load %arg1[%c0, %c0_0] : memref<8x32xf32, #tpu.memory_space<vmem>>, vector<8x32xf32>
    %c0_1 = arith.constant 0 : index
    %c0_2 = arith.constant 0 : index
    %c0_3 = arith.constant 0 : index
    %1 = vector.load %arg2[%c0_1, %c0_2, %c0_3] : memref<1x1x8xi32, #tpu.memory_space<vmem>>, vector<1x1x8xi32>
    %2 = vector.shape_cast %1 : vector<1x1x8xi32> to vector<8x1xi32>
    %cst = arith.constant dense<0xFF800000> : vector<8xf32>
    %3 = vector.multi_reduction <maximumf>, %0, %cst [1] : vector<8x32xf32> to vector<8xf32>
    %4 = vector.shape_cast %3 : vector<8xf32> to vector<8x1xf32>
    %5 = vector.broadcast %4 : vector<8x1xf32> to vector<8x32xf32>
    %6 = arith.subf %0, %5 : vector<8x32xf32>
    %7 = math.exp %6 : vector<8x32xf32>
    %cst_4 = arith.constant dense<0.000000e+00> : vector<8xf32>
    %8 = vector.multi_reduction <add>, %7, %cst_4 [1] : vector<8x32xf32> to vector<8xf32>
    %9 = vector.shape_cast %8 : vector<8xf32> to vector<8x1xf32>
    %10 = math.log %9 : vector<8x1xf32>
    %11 = tpu.iota {dimensions = array<i32: 1>} : vector<1x32xi32>
    %12 = vector.broadcast %11 : vector<1x32xi32> to vector<8x32xi32>
    %13 = vector.broadcast %2 : vector<8x1xi32> to vector<8x32xi32>
    %14 = arith.cmpi eq, %12, %13 : vector<8x32xi32>
    %cst_5 = arith.constant 0.899999976 : f32
    %cst_6 = arith.constant 0.0032258064 : f32
    %15 = vector.broadcast %cst_5 : f32 to vector<8x32xf32>
    %16 = vector.broadcast %cst_6 : f32 to vector<8x32xf32>
    %17 = arith.select %14, %15, %16 : vector<8x32xi1>, vector<8x32xf32>
    %18 = arith.mulf %17, %6 : vector<8x32xf32>
    %cst_7 = arith.constant dense<0.000000e+00> : vector<8xf32>
    %19 = vector.multi_reduction <add>, %18, %cst_7 [1] : vector<8x32xf32> to vector<8xf32>
    %20 = vector.shape_cast %19 : vector<8xf32> to vector<8x1xf32>
    %21 = arith.subf %20, %10 : vector<8x1xf32>
    %cst_8 = arith.constant -0.668481708 : f32
    %22 = vector.broadcast %cst_8 : f32 to vector<8x1xf32>
    %23 = arith.subf %22, %21 : vector<8x1xf32>
    %c0_i32 = arith.constant 0 : i32
    %24 = vector.broadcast %c0_i32 : i32 to vector<8x1xi32>
    %25 = arith.cmpi ne, %2, %24 : vector<8x1xi32>
    %cst_9 = arith.constant 0.000000e+00 : f32
    %26 = vector.broadcast %cst_9 : f32 to vector<8x1xf32>
    %27 = arith.select %25, %23, %26 : vector<8x1xi1>, vector<8x1xf32>
    %28 = vector.shape_cast %27 : vector<8x1xf32> to vector<1x8x1xf32>
    %cst_10 = arith.constant dense<0.000000e+00> : vector<1xf32>
    %29 = vector.multi_reduction <add>, %28, %cst_10 [1, 2] : vector<1x8x1xf32> to vector<1xf32>
    %30 = vector.shape_cast %29 : vector<1xf32> to vector<1x1x1xf32>
    %31 = vector.extract %30[0, 0, 0] : f32 from vector<1x1x1xf32>
    %32 = vector.broadcast %31 : f32 to vector<1x1x128xf32>
    %c0_11 = arith.constant 0 : index
    %c0_12 = arith.constant 0 : index
    %c0_13 = arith.constant 0 : index
    %33 = vector.load %arg3[%c0_11, %c0_12, %c0_13] : memref<1x1x128xf32, #tpu.memory_space<vmem>>, vector<1x1x128xf32>
    tpu.vector_store %arg3[%c0_11, %c0_12, %c0_13], %32 {strides = array<i32>} : memref<1x1x128xf32, #tpu.memory_space<vmem>>, vector<1x1x128xf32>,
    return
  }
  func.func @transform_0(%arg0: i32) -> (i32, i32) {
    %c0_i32 = arith.constant 0 : i32
    %c0_i32_0 = arith.constant 0 : i32
    return %arg0, %c0_i32 : i32, i32
  }
  func.func @transform_1(%arg0: i32) -> (i32, i32, i32) {
    %c0_i32 = arith.constant 0 : i32
    %c0_i32_0 = arith.constant 0 : i32
    %c0_i32_1 = arith.constant 0 : i32
    return %arg0, %c0_i32, %c0_i32_0 : i32, i32, i32
  }
  func.func @transform_2(%arg0: i32) -> (i32, i32, i32) {
    %c0_i32 = arith.constant 0 : i32
    %c0_i32_0 = arith.constant 0 : i32
    %c0_i32_1 = arith.constant 0 : i32
    return %arg0, %c0_i32, %c0_i32_0 : i32, i32, i32
  }
}

</mosaic_0001>

<llo_original>
// kernel: tpu_custom_call.1
$region0: #{tpu_custom_call.1}
  #allocation0 [shape = 'u32[]', space=smem, size = 0x4, offset = 0x4, fixed_abs, tag = 'smem constant byte address 0x4 - core index']
  #allocation1 [shape = 'u32[144,128]{1,0:T(1,128)}', space=vmem, size = 0x12000, scoped, tag = 'internal scratch']
  %s0 = inlined_call_operand.hbm [shape: f32[16,32], index: 0, kind: input, shape index: {}]
  %s1 = inlined_call_operand.hbm [shape: s32[2,1,8], index: 1, kind: input, shape index: {}]
  %s2 = inlined_call_operand.hbm [shape: f32[2,1,128], index: 2, kind: output, shape index: {}]
  %s3 = sld [smem:[#allocation0]]
  $region49: #{tpu_custom_call.1} parent=0
    _
  %s5 = ssub.s32 1, %s3
  %s6 = scalar_select 0, %s5, %s3
  $region1: #{tpu_custom_call.1} parent=0
    #allocation2 [shape = 'u8[8192]{0}', space=vmem, size = 0x2000, scoped, tag = 'input window, operand 0']
    #allocation3 [shape = 's32[2]{0}', space=sflag, size = 0x8, scoped, tag = 'scoped memory for tpu_custom_call.1']
    #allocation4 [shape = 's32[2]{0}', space=sflag, size = 0x8, scoped, tag = 'scoped memory for tpu_custom_call.1']
    #allocation5 [shape = 'u8[1024]{0}', space=vmem, size = 0x400, scoped, tag = 'input window, operand 1']
    #allocation6 [shape = 's32[2]{0}', space=sflag, size = 0x8, scoped, tag = 'scoped memory for tpu_custom_call.1']
    #allocation7 [shape = 'u8[1024]{0}', space=vmem, size = 0x400, scoped, tag = 'output window, operand 0']
    %7 = vsyncpa [#allocation3], 0
    %s8 = scalar_lea.sflag [#allocation3], 1
    %9 = vsyncpa %s8, 0
    %10 = vsyncpa [#allocation6], 0
    %s11 = scalar_lea.sflag [#allocation6], 1
    %12 = vsyncpa %s11, 0
    %13 = vsyncpa [#allocation4], 0
    %s14 = scalar_lea.sflag [#allocation4], 1
    %15 = vsyncpa %s14, 0
    loop: start=0, step=1, limit=4
    $region2: #{tpu_custom_call.1} parent=1 // loop_pre_header
      _
    $region3: #{tpu_custom_call.1} parent=1 // loop_header
      %s17 = sphi 0, %s21
      %p18 = scmp.ge.s32.totalorder %s17, 4
      %s27 = sphi 0, %s29
      %s30 = sphi 0, %s27
      %s31 = sphi 0, %s30
      %s47 = sphi 0, %s31
      %s53 = sphi 0, %s55
      %s56 = sphi 0, %s53
      %s57 = sphi 0, %s56
      %s73 = sphi 0, %s57
      %s79 = sphi 0, %s81
      %s82 = sphi 0, %s79
      %s83 = sphi 0, %s82
      %s99 = sphi 0, %s83
    $region4: #{tpu_custom_call.1} parent=1 // loop_header_branch
      %20 = sbr.rel (%p18) target = $region8
    $region5: #{tpu_custom_call.1} parent=1 // loop_body
      %s22 = ssub.s32 %s17, 1
      %s23 = ssub.s32 %s17, 2
      %s24 = sadd.s32 %s17, 1
      %s25 = ssub.s32 %s17, %s24
      %p26 = scmp.eq.s32.totalorder %s25, 0
      %s28 = sadd.s32 %s27, 1
      %s29 = scalar_select %p26, %s27, %s28
      %p32 = pneg %p26
      %p33 = scmp.eq.s32.totalorder %s17, 1
      %p34 = por %p32, %p33
      %p35 = scmp.ne.s32.totalorder %s27, %s30
      %p36 = scmp.eq.s32.totalorder %s17, 0
      %p37 = por %p35, %p36
      %p38 = scmp.ne.s32.totalorder %s27, %s30
      %p39 = scmp.eq.s32.totalorder %s22, 1
      %p40 = por %p38, %p39
      %p41 = scmp.ne.s32.totalorder %s30, %s31
      %p42 = scmp.eq.s32.totalorder %s22, 0
      %p43 = por %p41, %p42
      %p44 = scmp.ne.s32.totalorder %s30, %s31
      %p45 = scmp.eq.s32.totalorder %s23, 1
      %p46 = por %p44, %p45
      %p48 = scmp.ne.s32.totalorder %s31, %s47
      %p49 = scmp.eq.s32.totalorder %s23, 0
      %p50 = por %p48, %p49
      %s51 = ssub.s32 %s17, %s24
      %p52 = scmp.eq.s32.totalorder %s51, 0
      %s54 = sadd.s32 %s53, 1
      %s55 = scalar_select %p52, %s53, %s54
      %p58 = pneg %p52
      %p59 = scmp.eq.s32.totalorder %s17, 1
      %p60 = por %p58, %p59
      %p61 = scmp.ne.s32.totalorder %s53, %s56
      %p62 = scmp.eq.s32.totalorder %s17, 0
      %p63 = por %p61, %p62
      %p64 = scmp.ne.s32.totalorder %s53, %s56
      %p65 = scmp.eq.s32.totalorder %s22, 1
      %p66 = por %p64, %p65
      %p67 = scmp.ne.s32.totalorder %s56, %s57
      %p68 = scmp.eq.s32.totalorder %s22, 0
      %p69 = por %p67, %p68
      %p70 = scmp.ne.s32.totalorder %s56, %s57
      %p71 = scmp.eq.s32.totalorder %s23, 1
      %p72 = por %p70, %p71
      %p74 = scmp.ne.s32.totalorder %s57, %s73
      %p75 = scmp.eq.s32.totalorder %s23, 0
      %p76 = por %p74, %p75
      %s77 = ssub.s32 %s17, %s24
      %p78 = scmp.eq.s32.totalorder %s77, 0
      %s80 = sadd.s32 %s79, 1
      %s81 = scalar_select %p78, %s79, %s80
      %p84 = pneg %p78
      %p85 = scmp.eq.s32.totalorder %s17, 1
      %p86 = por %p84, %p85
      %p87 = scmp.ne.s32.totalorder %s79, %s82
      %p88 = scmp.eq.s32.totalorder %s17, 0
      %p89 = por %p87, %p88
      %p90 = scmp.ne.s32.totalorder %s79, %s82
      %p91 = scmp.eq.s32.totalorder %s22, 1
      %p92 = por %p90, %p91
      %p93 = scmp.ne.s32.totalorder %s82, %s83
      %p94 = scmp.eq.s32.totalorder %s22, 0
      %p95 = por %p93, %p94
      %p96 = scmp.ne.s32.totalorder %s82, %s83
      %p97 = scmp.eq.s32.totalorder %s23, 1
      %p98 = por %p96, %p97
      %p100 = scmp.ne.s32.totalorder %s83, %s99
      %p101 = scmp.eq.s32.totalorder %s23, 0
      %p102 = por %p100, %p101
      %p103 = scmp.le.s32.totalorder 1, %s17
      %p104 = scmp.lt.s32.totalorder %s17, 3
      %p105 = pnand %p103, %p104
      %p106 = pneg %p105
      // Predicated region
      $region9: #{tpu_custom_call.1} parent=5 // pred_check
        _
      $region10: #{tpu_custom_call.1} parent=5 // pred_check_branch
        %108 = sbr.rel (%p105) target = $region12
      $region11: #{tpu_custom_call.1} parent=5 // pred_region
        %s109 = ssub.s32 %s17, 1
      $region12: #{tpu_custom_call.1} parent=5 // pred_fallthru
        _
      %p110 = scmp.lt.s32.totalorder %s17, 2
      // Predicated region
      $region13: #{tpu_custom_call.1} parent=5 // pred_check
        %p111 = pneg %p110
      $region14: #{tpu_custom_call.1} parent=5 // pred_check_branch
        %113 = sbr.rel (%p111) target = $region16
      $region15: #{tpu_custom_call.1} parent=5 // pred_region
        // Predicated region
        $region17: #{tpu_custom_call.1} parent=15 // pred_check
          %p114 = pneg %p37
        $region18: #{tpu_custom_call.1} parent=15 // pred_check_branch
          %116 = sbr.rel (%p114) target = $region20
        $region19: #{tpu_custom_call.1} parent=15 // pred_region
          %s117 = sand.u32 %s27, 1
          %s118 = scalar_lea.sflag [#allocation3], %s117
          %s119 = sand.u32 %s27, 1
          %s120 = smul.addr %s119, 8
          %s121 = scalar_lea.vmem [#allocation2], %s120
          %s123 = ssub.s32 128, 128
          %124 = vsyncadd %s118, %s123
          %s125 = smul.addr %s17, 128
          %s126 = scalar_lea.hbm %s0, %s125
          %s128 = sshll.u32 %s121, 4
          %s129 = int_to_ptr.vmem [resolvable:$true] %s128
          %131 = dma.hbm_to_vmem [thread:$0]  %s126, 128, %s129, %s118
        $region20: #{tpu_custom_call.1} parent=15 // pred_fallthru
          _
        // Predicated region
        $region21: #{tpu_custom_call.1} parent=15 // pred_check
          %p132 = pneg %p63
        $region22: #{tpu_custom_call.1} parent=15 // pred_check_branch
          %134 = sbr.rel (%p132) target = $region24
        $region23: #{tpu_custom_call.1} parent=15 // pred_region
          %s135 = sand.u32 %s53, 1
          %s136 = scalar_lea.sflag [#allocation6], %s135
          %s137 = sand.u32 %s53, 1
          %s138 = scalar_lea.vmem [#allocation5], %s137
          %s140 = ssub.s32 16, 16
          %141 = vsyncadd %s136, %s140
          %s142 = smul.addr %s17, 16
          %s143 = scalar_lea.hbm %s1, %s142
          %s145 = sshll.u32 %s138, 4
          %s146 = int_to_ptr.vmem [resolvable:$true] %s145
          %148 = dma.hbm_to_vmem [thread:$0]  %s143, 16, %s146, %s136
        $region24: #{tpu_custom_call.1} parent=15 // pred_fallthru
          _
      $region16: #{tpu_custom_call.1} parent=5 // pred_fallthru
        _
      %p149 = scmp.le.s32.totalorder 1, %s17
      %p150 = scmp.lt.s32.totalorder %s17, 3
      %p151 = pnand %p149, %p150
      %p152 = pneg %p151
      // Predicated region
      $region25: #{tpu_custom_call.1} parent=5 // pred_check
        _
      $region26: #{tpu_custom_call.1} parent=5 // pred_check_branch
        %154 = sbr.rel (%p151) target = $region28
      $region27: #{tpu_custom_call.1} parent=5 // pred_region
        %s155 = ssub.s32 %s17, 1
        %s156 = sand.u32 %s30, 1
        %s157 = scalar_lea.sflag [#allocation3], %s156
        %s158 = sand.u32 %s30, 1
        %s159 = smul.addr %s158, 8
        %s160 = scalar_lea.vmem [#allocation2], %s159
        // Predicated region
        $region29: #{tpu_custom_call.1} parent=27 // pred_check
          %p161 = pneg %p43
        $region30: #{tpu_custom_call.1} parent=27 // pred_check_branch
          %163 = sbr.rel (%p161) target = $region32
        $region31: #{tpu_custom_call.1} parent=27 // pred_region
          %164 = dma.done %s157, 128
        $region32: #{tpu_custom_call.1} parent=27 // pred_fallthru
          _
        %s165 = sand.u32 %s56, 1
        %s166 = scalar_lea.sflag [#allocation6], %s165
        %s167 = sand.u32 %s56, 1
        %s168 = scalar_lea.vmem [#allocation5], %s167
        // Predicated region
        $region33: #{tpu_custom_call.1} parent=27 // pred_check
          %p169 = pneg %p69
        $region34: #{tpu_custom_call.1} parent=27 // pred_check_branch
          %171 = sbr.rel (%p169) target = $region36
        $region35: #{tpu_custom_call.1} parent=27 // pred_region
          %172 = dma.done %s166, 16
        $region36: #{tpu_custom_call.1} parent=27 // pred_fallthru
          _
        %s173 = sand.u32 %s30, 1
        %s174 = scalar_lea.sflag [#allocation3], %s173
        %s175 = sand.u32 %s30, 1
        %s176 = smul.addr %s175, 8
        %s177 = scalar_lea.vmem [#allocation2], %s176
        %p178 = pneg %p43
        %p179 = pneg %p40
        %s180 = sand.u32 %s56, 1
        %s181 = scalar_lea.sflag [#allocation6], %s180
        %s182 = sand.u32 %s56, 1
        %s183 = scalar_lea.vmem [#allocation5], %s182
        %p184 = pneg %p69
        %p185 = pneg %p66
        %p186 = pneg %p95
        %p187 = pneg %p92
        %s188 = sand.u32 %s82, 1
        %s189 = scalar_lea.sflag [#allocation4], %s188
        %s190 = sand.u32 %s82, 1
        %s191 = scalar_lea.vmem [#allocation7], %s190
        %v192 = vld [vmem:[%s160] sm:$0xff]
        %v193 = vld [vmem:[%s168] sm:$0x1]
        %v194 = vlaneseq
        %v195 = vshrl.u32 %v194, 7
        %v196 = vsub.s32 0, %v195
        %v197 = vrot.slane %v193, %v196
        %199 = vbcast.lane.b32.xlu0 %v197, 256
        %v200 = vpop.permute.xlu0 %199
        %vm201 = vcmask 261120
        %v202 = vsel %vm201, %v192, -inf
        %203 = vmax.xlane.f32.xlu0 %v202
        %v204 = vpop.xlane.xlu0 %203
        %v205 = vsub.f32 %v192, %v204
        %v206 = vmul.f32 %v205, 1.442695
        %v207 = vpow.pop %v206
        %v208 = vsel %vm201, %v207, 0.0
        %209 = vadd.xlane.f32.xlu0 %v208
        %v210 = vpop.xlane.xlu0 %209
        %v211 = vlog2.pop %v210
        %v212 = vmul.f32 %v211, 0.6931472
        %v213 = vlaneseq
        %v214 = vand.u32 %v213, 127
        %vm215 = vcmp.eq.s32.totalorder %v214, %v200
        %v216 = vsel %vm215, 0.9, 0.0032258064
        %v217 = vmul.f32 %v216, %v205
        %v218 = vsel %vm201, %v217, 0.0
        %219 = vadd.xlane.f32.xlu0 %v218
        %v220 = vpop.xlane.xlu0 %219
        %v221 = vsub.f32 %v220, %v212
        %v222 = vsub.f32 -0.6684817, %v221
        %vm223 = vcmp.ne.s32.totalorder %v200, 0
        %v224 = vsel %vm223, %v222, 0.0
        %vm225 = vcmask 7168
        %v226 = vsel %vm225, %v224, 0.0
        %227 = vadd.xlane.f32.xlu0 %v226
        %v228 = vpop.xlane.xlu0 %227
        %v229 = vrot.slane %v228, 4
        %v230 = vadd.f32 %v228, %v229
        %v231 = vrot.slane %v230, 2
        %v232 = vadd.f32 %v230, %v231
        %v233 = vrot.slane %v232, 1
        %v234 = vadd.f32 %v232, %v233
        %s235 = vtos %v234
        %v236 = vstv %s235
        %237 = vst [vmem:[%s191] sm:$0x1] %v236
        %s238 = sand.u32 %s82, 1
        %s239 = scalar_lea.sflag [#allocation4], %s238
        %s240 = sand.u32 %s82, 1
        %s241 = scalar_lea.vmem [#allocation7], %s240
        // Predicated region
        $region37: #{tpu_custom_call.1} parent=27 // pred_check
          %p242 = pneg %p92
        $region38: #{tpu_custom_call.1} parent=27 // pred_check_branch
          %244 = sbr.rel (%p242) target = $region40
        $region39: #{tpu_custom_call.1} parent=27 // pred_region
          %s246 = ssub.s32 16, 16
          %247 = vsyncadd %s239, %s246
          %s248 = smul.addr %s22, 16
          %s249 = scalar_lea.hbm %s2, %s248
          %s251 = sshll.u32 %s241, 4
          %s252 = int_to_ptr.vmem [resolvable:$true] %s251
          %254 = dma.vmem_to_hbm [thread:$0]  %s252, 16, %s249, %s239
        $region40: #{tpu_custom_call.1} parent=27 // pred_fallthru
          _
      $region28: #{tpu_custom_call.1} parent=5 // pred_fallthru
        _
      %p255 = scmp.le.s32.totalorder 2, %s17
      // Predicated region
      $region41: #{tpu_custom_call.1} parent=5 // pred_check
        %p256 = pneg %p255
      $region42: #{tpu_custom_call.1} parent=5 // pred_check_branch
        %258 = sbr.rel (%p256) target = $region44
      $region43: #{tpu_custom_call.1} parent=5 // pred_region
        %s259 = ssub.s32 %s17, 2
        // Predicated region
        $region45: #{tpu_custom_call.1} parent=43 // pred_check
          %p260 = pneg %p98
        $region46: #{tpu_custom_call.1} parent=43 // pred_check_branch
          %262 = sbr.rel (%p260) target = $region48
        $region47: #{tpu_custom_call.1} parent=43 // pred_region
          %s263 = sand.u32 %s83, 1
          %s264 = scalar_lea.sflag [#allocation4], %s263
          %s265 = sand.u32 %s83, 1
          %s266 = scalar_lea.vmem [#allocation7], %s265
          %267 = dma.done %s264, 16
        $region48: #{tpu_custom_call.1} parent=43 // pred_fallthru
          _
      $region44: #{tpu_custom_call.1} parent=5 // pred_fallthru
        _
    $region6: #{tpu_custom_call.1} parent=1 // loop_footer
      %s21 = sadd.s32 1, %s17
    $region7: #{tpu_custom_call.1} parent=1 // loop_footer_branch
      %16 = sbr.rel target = $region3
    $region8: #{tpu_custom_call.1} parent=1 // loop_exit
      _
    %268 = vsyncpa [#allocation3], 1
    %s269 = scalar_lea.sflag [#allocation3], 1
    %270 = vsyncpa %s269, 1
    %271 = vsyncpa [#allocation6], 1
    %s272 = scalar_lea.sflag [#allocation6], 1
    %273 = vsyncpa %s272, 1
    %274 = vsyncpa [#allocation4], 1
    %s275 = scalar_lea.sflag [#allocation4], 1
    %276 = vsyncpa %s275, 1

</llo_original>
